<compile_context>
chip_gen: v7x
topology: tpu7x:2x2x1
jax: 0.10.0
libtpu: 0.0.40
codegen_flags: <defaults>
</compile_context>

<pallas_src>
import math

import jax
import jax.numpy as jnp
from jax.experimental import pallas as pl
from jax.experimental.pallas import tpu as pltpu


_DEFAULT_TILE_B = 4096     # ~512 KiB of bf16 x per buffer at n_in=32
_MIN_SPLIT_B = 512         # below this, splitting the batch in two isn't worth it
_SUBLANE = 16              # round batch dims to 16 (safe for bf16 sublane packing)


def _round_up(x, m):
    return (x + m - 1) // m * m


def _fssn_kernel(x_ref, w1_ref, b1_ref, w2_ref, b2_ref, o_ref):
    # Both matmuls + bias + sigmoid fused in one grid step.
    x = x_ref[...]                                             # (tb, n_in)  [bf16|f32]
    h = jnp.dot(x, w1_ref[...], preferred_element_type=jnp.float32)
    h = jax.nn.sigmoid(h + b1_ref[...])                        # (tb, hid_p) f32
    y = jnp.dot(h.astype(w2_ref.dtype), w2_ref[...],
                preferred_element_type=jnp.float32)
    y = jax.nn.sigmoid(y + b2_ref[...])                        # (tb, ens_p) f32
    o_ref[...] = y.astype(o_ref.dtype)


def fssn_forward(x, w1, b1, w2, b2, *, tile_b=None, use_bf16=True):
    """Pallas FSSN forward.

    Args:
      x:  (B, n_inputs) float32
      w1: (hidden, n_inputs)   -- PyTorch nn.Linear weight layout
      b1: (hidden,)
      w2: (n_ensemble, hidden)
      b2: (n_ensemble,)
      tile_b:   batch rows per grid step (default: bounded, VMEM-friendly choice)
      use_bf16: stream x/W1/W2 as bf16 (f32 accumulate + f32 sigmoid). Set False
                for bit-for-bit f32 semantics.
    Returns:
      (B, n_ensemble) float32
    """
    B, n_in = x.shape
    hidden = w1.shape[0]
    n_ens = w2.shape[0]

    # --- padded compute dims (nice vreg/MXU tiles; padding is exact: padded
    #     hidden units feed zero rows of W2, padded output cols are sliced off).
    hid_p = _round_up(hidden, 128)     # 50  -> 128 (lane-dense hidden)
    ens_p = _round_up(n_ens, 8)        # 4   -> 8

    # --- batch tile selection: large-but-bounded, and >= 2 grid steps when the
    #     batch is big enough (v7x megacore + DMA/compute overlap).
    if tile_b is None:
        tile_b = _DEFAULT_TILE_B
        if _MIN_SPLIT_B <= B <= tile_b:
            tile_b = _round_up(pl.cdiv(B, 2), _SUBLANE)
    tile_b = max(_SUBLANE, min(_round_up(tile_b, _SUBLANE), _round_up(B, _SUBLANE)))
    B_pad = _round_up(B, tile_b)
    grid = (B_pad // tile_b,)

    # --- one-time glue: dtype cast, transpose to x @ W form, zero-pad, 2D biases.
    cdt = jnp.bfloat16 if use_bf16 else jnp.float32
    x_c = jnp.asarray(x, cdt)
    if B_pad != B:
        x_c = jnp.pad(x_c, ((0, B_pad - B), (0, 0)))
    w1t = jnp.pad(jnp.asarray(w1, cdt).T, ((0, 0), (0, hid_p - hidden)))
    b1r = jnp.pad(jnp.asarray(b1, jnp.float32),
                  (0, hid_p - hidden)).reshape(1, hid_p)
    w2t = jnp.pad(jnp.asarray(w2, cdt).T,
                  ((0, hid_p - hidden), (0, ens_p - n_ens)))
    b2r = jnp.pad(jnp.asarray(b2, jnp.float32),
                  (0, ens_p - n_ens)).reshape(1, ens_p)

    # --- scheduler hint for XLA around the custom call.
    flops = 2 * B_pad * (n_in * hid_p + hid_p * ens_p)
    transcendentals = B_pad * (hid_p + ens_p)
    bytes_accessed = int(
        x_c.size * x_c.dtype.itemsize
        + w1t.size * w1t.dtype.itemsize
        + w2t.size * w2t.dtype.itemsize
        + (b1r.size + b2r.size) * 4
        + B_pad * ens_p * 4)

    out = pl.pallas_call(
        _fssn_kernel,
        out_shape=jax.ShapeDtypeStruct((B_pad, ens_p), jnp.float32),
        grid_spec=pltpu.PrefetchScalarGridSpec(
            num_scalar_prefetch=0,
            grid=grid,
            in_specs=[
                # batch-tiled activation stream (the only real HBM traffic)
                pl.BlockSpec((tile_b, n_in), lambda i: (i, 0)),
                # weights / biases: constant index_map -> resident across steps
                pl.BlockSpec((n_in, hid_p), lambda i: (0, 0)),
                pl.BlockSpec((1, hid_p), lambda i: (0, 0)),
                pl.BlockSpec((hid_p, ens_p), lambda i: (0, 0)),
                pl.BlockSpec((1, ens_p), lambda i: (0, 0)),
            ],
            out_specs=pl.BlockSpec((tile_b, ens_p), lambda i: (i, 0)),
        ),
        compiler_params=pltpu.CompilerParams(
            dimension_semantics=("parallel",)),
        cost_estimate=pl.CostEstimate(
            flops=flops,
            transcendentals=transcendentals,
            bytes_accessed=bytes_accessed),
    )(x_c, w1t, b1r, w2t, b2r)

    return out[:B, :n_ens]


# ----------------------------------------------------------------------------
# Parameter init matching the PyTorch Suppression_Layer, and pure-JAX references
# ----------------------------------------------------------------------------

def _xavier_uniform(key, out_features, in_features, gain):
    # matches nn.init.xavier_uniform_(weight, gain) for a (out, in) weight
    a = gain * math.sqrt(6.0 / (in_features + out_features))
    return jax.random.uniform(key, (out_features, in_features),
                              minval=-a, maxval=a, dtype=jnp.float32)


def init_fssn_params(key, n_inputs, n_ensemble, n_nodes=50):
    hidden = max(n_nodes, 3 * n_ensemble)
    k1, k2, k3, k4 = jax.random.split(key, 4)
    gain = math.sqrt(3.0)
    w1 = _xavier_uniform(k1, hidden, n_inputs, gain)
    b1_bound = 1.0 / math.sqrt(n_inputs)          # fan_in of sup1 weight
    b1 = jax.random.uniform(k2, (hidden,), minval=-b1_bound, maxval=b1_bound,
                            dtype=jnp.float32)
    w2 = _xavier_uniform(k3, n_ensemble, hidden, gain)
    b2_bound = 1.0 / math.sqrt(hidden)            # fan_in of out weight
    b2 = jax.random.uniform(k4, (n_ensemble,), minval=-b2_bound, maxval=b2_bound,
                            dtype=jnp.float32)
    return w1, b1, w2, b2


def fssn_reference(x, w1, b1, w2, b2):
    h = jax.nn.sigmoid(x @ w1.T + b1)
    return jax.nn.sigmoid(h @ w2.T + b2)


def fssn_reference_bf16(x, w1, b1, w2, b2):
    # Same bf16 quantization as the kernel's default streaming path, with f32
    # accumulation and f32 sigmoid.
    xb = x.astype(jnp.bfloat16)
    w1b = w1.astype(jnp.bfloat16)
    w2b = w2.astype(jnp.bfloat16)
    h = jax.nn.sigmoid(
        jnp.dot(xb, w1b.T, preferred_element_type=jnp.float32) + b1)
    hb = h.astype(jnp.bfloat16)
    return jax.nn.sigmoid(
        jnp.dot(hb, w2b.T, preferred_element_type=jnp.float32) + b2)


if __name__ == "__main__":
    key = jax.random.PRNGKey(0)
    k_x, k_p, k_x2 = jax.random.split(key, 3)

    # Small shapes consistent with the module: batch=8, n_inputs=32,
    # n_ensemble=4 -> hidden = max(50, 12) = 50.
    batch, n_inputs, n_ensemble = 8, 32, 4
    x = jax.random.normal(k_x, (batch, n_inputs), dtype=jnp.float32)
    w1, b1, w2, b2 = init_fssn_params(k_p, n_inputs, n_ensemble)

    # 1) f32 path: matches the f32 reference forward.
    out_f32 = jax.block_until_ready(
        fssn_forward(x, w1, b1, w2, b2, use_bf16=False))
    ref = fssn_reference(x, w1, b1, w2, b2)
    assert out_f32.shape == (batch, n_ensemble)
    assert jnp.allclose(out_f32, ref, atol=1e-5, rtol=1e-5)

    # 2) default bf16-streaming path: tight vs bf16-quantized reference, loose
    #    vs the pure-f32 reference.
    out_bf = jax.block_until_ready(fssn_forward(x, w1, b1, w2, b2))
    ref_bf = fssn_reference_bf16(x, w1, b1, w2, b2)
    assert out_bf.shape == (batch, n_ensemble)
    assert jnp.allclose(out_bf, ref_bf, atol=1e-3, rtol=1e-3)
    assert jnp.allclose(out_bf, ref, atol=3e-2, rtol=3e-2)

    # 3) non-multiple batch + multi-step grid (exercises batch padding and the
    #    pipelined/parallel grid path).
    x2 = jax.random.normal(k_x2, (300, n_inputs), dtype=jnp.float32)
    out2 = jax.block_until_ready(
        fssn_forward(x2, w1, b1, w2, b2, tile_b=128, use_bf16=False))
    ref2 = fssn_reference(x2, w1, b1, w2, b2)
    assert out2.shape == (300, n_ensemble)
    assert jnp.allclose(out2, ref2, atol=1e-5, rtol=1e-5)

    print("KERNEL_OK")
</pallas_src>

<mosaic_0001>
module attributes {stable_mosaic.version = 11 : i64} {
  func.func @_fssn_kernel(%arg0: i32, %arg1: memref<16x32xf32, #tpu.memory_space<vmem>>, %arg2: memref<32x128xf32, #tpu.memory_space<vmem>>, %arg3: memref<1x128xf32, #tpu.memory_space<vmem>>, %arg4: memref<128x8xf32, #tpu.memory_space<vmem>>, %arg5: memref<1x8xf32, #tpu.memory_space<vmem>>, %arg6: memref<16x8xf32, #tpu.memory_space<vmem>>) attributes {dimension_semantics = [#tpu.dimension_semantics<parallel>], iteration_bounds = array<i64: 1>, scalar_prefetch = 0 : i64, scratch_operands = 0 : i64, tpu.core_type = #tpu.core_type<tc>, window_params = [{transform_indices = @transform_0, window_bounds = array<i64: 16, 32>}, {pipeline_mode = #tpu.pipeline_mode<synchronous>, transform_indices = @transform_1, window_bounds = array<i64: 32, 128>}, {pipeline_mode = #tpu.pipeline_mode<synchronous>, transform_indices = @transform_2, window_bounds = array<i64: 1, 128>}, {pipeline_mode = #tpu.pipeline_mode<synchronous>, transform_indices = @transform_3, window_bounds = array<i64: 128, 8>}, {pipeline_mode = #tpu.pipeline_mode<synchronous>, transform_indices = @transform_4, window_bounds = array<i64: 1, 8>}, {transform_indices = @transform_5, window_bounds = array<i64: 16, 8>}]} {
    %c0 = arith.constant 0 : index
    %c0_0 = arith.constant 0 : index
    %0 = vector.load %arg1[%c0, %c0_0] : memref<16x32xf32, #tpu.memory_space<vmem>>, vector<16x32xf32>
    %c0_1 = arith.constant 0 : index
    %c0_2 = arith.constant 0 : index
    %1 = vector.load %arg2[%c0_1, %c0_2] : memref<32x128xf32, #tpu.memory_space<vmem>>, vector<32x128xf32>
    %cst = arith.constant dense<0.000000e+00> : vector<16x128xf32>
    %2 = tpu.matmul %0, %1, %cst {dimension_numbers = #tpu.dot_dimension_numbers<[1], [0], [0], [1], [0, 0, 1, 1], [], []>} : vector<16x32xf32>, vector<32x128xf32>, vector<16x128xf32> -> vector<16x128xf32>
    %c0_3 = arith.constant 0 : index
    %c0_4 = arith.constant 0 : index
    %3 = vector.load %arg3[%c0_3, %c0_4] : memref<1x128xf32, #tpu.memory_space<vmem>>, vector<1x128xf32>
    %4 = vector.broadcast %3 : vector<1x128xf32> to vector<16x128xf32>
    %5 = arith.addf %2, %4 : vector<16x128xf32>
    %6 = arith.negf %5 : vector<16x128xf32>
    %7 = math.exp %6 : vector<16x128xf32>
    %cst_5 = arith.constant 1.000000e+00 : f32
    %8 = vector.broadcast %cst_5 : f32 to vector<16x128xf32>
    %9 = arith.addf %8, %7 : vector<16x128xf32>
    %10 = arith.divf %8, %9 : vector<16x128xf32>
    %c0_6 = arith.constant 0 : index
    %c0_7 = arith.constant 0 : index
    %11 = vector.load %arg4[%c0_6, %c0_7] : memref<128x8xf32, #tpu.memory_space<vmem>>, vector<128x8xf32>
    %cst_8 = arith.constant dense<0.000000e+00> : vector<16x8xf32>
    %12 = tpu.matmul %10, %11, %cst_8 {dimension_numbers = #tpu.dot_dimension_numbers<[1], [0], [0], [1], [0, 0, 1, 1], [], []>} : vector<16x128xf32>, vector<128x8xf32>, vector<16x8xf32> -> vector<16x8xf32>
    %c0_9 = arith.constant 0 : index
    %c0_10 = arith.constant 0 : index
    %13 = vector.load %arg5[%c0_9, %c0_10] : memref<1x8xf32, #tpu.memory_space<vmem>>, vector<1x8xf32>
    %14 = vector.broadcast %13 : vector<1x8xf32> to vector<16x8xf32>
    %15 = arith.addf %12, %14 : vector<16x8xf32>
    %16 = arith.negf %15 : vector<16x8xf32>
    %17 = math.exp %16 : vector<16x8xf32>
    %cst_11 = arith.constant 1.000000e+00 : f32
    %18 = vector.broadcast %cst_11 : f32 to vector<16x8xf32>
    %19 = arith.addf %18, %17 : vector<16x8xf32>
    %20 = arith.divf %18, %19 : vector<16x8xf32>
    %c0_12 = arith.constant 0 : index
    %c0_13 = arith.constant 0 : index
    %21 = vector.load %arg6[%c0_12, %c0_13] : memref<16x8xf32, #tpu.memory_space<vmem>>, vector<16x8xf32>
    tpu.vector_store %arg6[%c0_12, %c0_13], %20 {strides = array<i32>} : memref<16x8xf32, #tpu.memory_space<vmem>>, vector<16x8xf32>,
    return
  }
  func.func @transform_0(%arg0: i32) -> (i32, i32) {
    %c0_i32 = arith.constant 0 : i32
    %c0_i32_0 = arith.constant 0 : i32
    return %arg0, %c0_i32 : i32, i32
  }
  func.func @transform_1(%arg0: i32) -> (i32, i32) {
    %c0_i32 = arith.constant 0 : i32
    %c0_i32_0 = arith.constant 0 : i32
    %c0_i32_1 = arith.constant 0 : i32
    return %c0_i32, %c0_i32_0 : i32, i32
  }
  func.func @transform_2(%arg0: i32) -> (i32, i32) {
    %c0_i32 = arith.constant 0 : i32
    %c0_i32_0 = arith.constant 0 : i32
    %c0_i32_1 = arith.constant 0 : i32
    return %c0_i32, %c0_i32_0 : i32, i32
  }
  func.func @transform_3(%arg0: i32) -> (i32, i32) {
    %c0_i32 = arith.constant 0 : i32
    %c0_i32_0 = arith.constant 0 : i32
    %c0_i32_1 = arith.constant 0 : i32
    return %c0_i32, %c0_i32_0 : i32, i32
  }
  func.func @transform_4(%arg0: i32) -> (i32, i32) {
    %c0_i32 = arith.constant 0 : i32
    %c0_i32_0 = arith.constant 0 : i32
    %c0_i32_1 = arith.constant 0 : i32
    return %c0_i32, %c0_i32_0 : i32, i32
  }
  func.func @transform_5(%arg0: i32) -> (i32, i32) {
    %c0_i32 = arith.constant 0 : i32
    %c0_i32_0 = arith.constant 0 : i32
    return %arg0, %c0_i32 : i32, i32
  }
}

</mosaic_0001>

<llo_original>
// kernel: tpu_custom_call.1
$region0: #{tpu_custom_call.1}
  #allocation0 [shape = 'u32[]', space=smem, size = 0x4, offset = 0x4, fixed_abs, tag = 'smem constant byte address 0x4 - core index']
  #allocation1 [shape = 'u32[144,128]{1,0:T(1,128)}', space=vmem, size = 0x12000, scoped, tag = 'internal scratch']
  %s0 = inlined_call_operand.vmem [shape: f32[16,32], index: 0, kind: input, shape index: {}]
  %s1 = inlined_call_operand.vmem [shape: f32[32,128], index: 1, kind: input, shape index: {}]
  %s2 = inlined_call_operand.vmem [shape: f32[1,128], index: 2, kind: input, shape index: {}]
  %s3 = inlined_call_operand.vmem [shape: f32[128,8], index: 3, kind: input, shape index: {}]
  %s4 = inlined_call_operand.vmem [shape: f32[1,8], index: 4, kind: input, shape index: {}]
  %s5 = inlined_call_operand.vmem [shape: f32[16,8], index: 5, kind: output, shape index: {}]
  %s6 = sld [smem:[#allocation0]]
  $region30: #{tpu_custom_call.1} parent=0
    _
  %s8 = ssub.s32 1, %s6
  %s9 = scalar_select 0, %s8, %s6
  // Predicated region
  $region2: #{tpu_custom_call.1} parent=0 // pred_check
    _
  $region3: #{tpu_custom_call.1} parent=0 // pred_check_branch
    %11 = sbr.rel (0) target = $region5
  $region4: #{tpu_custom_call.1} parent=0 // pred_region
    _
  $region5: #{tpu_custom_call.1} parent=0 // pred_fallthru
    _
  // Predicated region
  $region6: #{tpu_custom_call.1} parent=0 // pred_check
    _
  $region7: #{tpu_custom_call.1} parent=0 // pred_check_branch
    %13 = sbr.rel (0) target = $region9
  $region8: #{tpu_custom_call.1} parent=0 // pred_region
    _
  $region9: #{tpu_custom_call.1} parent=0 // pred_fallthru
    _
  // Predicated region
  $region10: #{tpu_custom_call.1} parent=0 // pred_check
    _
  $region11: #{tpu_custom_call.1} parent=0 // pred_check_branch
    %15 = sbr.rel (0) target = $region13
  $region12: #{tpu_custom_call.1} parent=0 // pred_region
    _
  $region13: #{tpu_custom_call.1} parent=0 // pred_fallthru
    _
  // Predicated region
  $region14: #{tpu_custom_call.1} parent=0 // pred_check
    _
  $region15: #{tpu_custom_call.1} parent=0 // pred_check_branch
    %17 = sbr.rel (0) target = $region17
  $region16: #{tpu_custom_call.1} parent=0 // pred_region
    _
  $region17: #{tpu_custom_call.1} parent=0 // pred_fallthru
    _
  // Predicated region
  $region18: #{tpu_custom_call.1} parent=0 // pred_check
    _
  $region19: #{tpu_custom_call.1} parent=0 // pred_check_branch
    %19 = sbr.rel (0) target = $region21
  $region20: #{tpu_custom_call.1} parent=0 // pred_region
    _
  $region21: #{tpu_custom_call.1} parent=0 // pred_fallthru
    _
  %v20 = vld [vmem:[%s0] sm:$0xff]
  %v21 = vld [vmem:[%s0 + $0x8] sm:$0xff]
  %v22 = vld [vmem:[%s1] sm:$0xff]
  %v23 = vld [vmem:[%s1 + $0x8] sm:$0xff]
  %v24 = vld [vmem:[%s1 + $0x10] sm:$0xff]
  %v25 = vld [vmem:[%s1 + $0x18] sm:$0xff]
  %v26 = vld [vmem:[%s2] sm:$0x1]
  %v28 = vlaneseq
  %v29 = vshrl.u32 %v28, 7
  %v30 = vsub.s32 0, %v29
  %v31 = vrot.slane %v26, %v30
  %vm33 = vcmask 261120
  %v35 = vsel %vm33, %v20, 0
  %v38 = vsel %vm33, %v21, 0
  %40 = vmatprep.subr.mxu0 0.0
  %41 = vmatpush1.msra.mxu0 %v22
  %42 = vmatprep.subr.mxu0 0.0
  %43 = vmatpush1.msra.mxu0 %v23
  %44 = vmatprep.subr.mxu0 0.0
  %45 = vmatpush1.msra.mxu0 %v24
  %46 = vmatprep.subr.mxu0 0.0
  %47 = vmatpush1.msra.mxu0 %v25
  %48 = vmatprep.subr.mxu0 0.0
  %49 = vmatpush1.msra.mxu0 0.0
  %50 = vmatprep.subr.mxu0 0.0
  %51 = vmatpush1.msra.mxu0 0.0
  %52 = vmatprep.subr.mxu0 0.0
  %53 = vmatpush1.msra.mxu0 0.0
  %54 = vmatprep.subr.mxu0 0.0
  %55 = vmatpush1.msra.mxu0 0.0
  %56 = vmatprep.subr.mxu0 0.0
  %57 = vmatpush1.msra.mxu0 0.0
  %58 = vmatprep.subr.mxu0 0.0
  %59 = vmatpush1.msra.mxu0 0.0
  %60 = vmatprep.subr.mxu0 0.0
  %61 = vmatpush1.msra.mxu0 0.0
  %62 = vmatprep.subr.mxu0 0.0
  %63 = vmatpush1.msra.mxu0 0.0
  %64 = vmatprep.subr.mxu0 0.0
  %65 = vmatpush1.msra.mxu0 0.0
  %66 = vmatprep.subr.mxu0 0.0
  %67 = vmatpush1.msra.mxu0 0.0
  %68 = vmatprep.subr.mxu0 0.0
  %69 = vmatpush1.msra.mxu0 0.0
  %70 = vmatprep.subr.mxu0 0.0
  %71 = vmatpush1.msra.mxu0 0.0
  %72 = vmatprep.subr.mxu0 0.0
  %73 = vmatpush1.msra.mxu0 0.0
  %74 = vmatprep.subr.mxu0 0.0
  %75 = vmatpush1.msra.mxu0 0.0
  %76 = vmatprep.subr.mxu0 0.0
  %77 = vmatpush1.msra.mxu0 0.0
  %78 = vmatprep.subr.mxu0 0.0
  %79 = vmatpush1.msra.mxu0 0.0
  %80 = vmatprep.subr.mxu0 0.0
  %81 = vmatpush1.msra.mxu0 0.0
  %82 = vmatprep.subr.mxu0 0.0
  %83 = vmatpush1.msra.mxu0 0.0
  %84 = vmatprep.subr.mxu0 0.0
  %85 = vmatpush1.msra.mxu0 0.0
  %86 = vmatprep.subr.mxu0 0.0
  %87 = vmatpush1.msra.mxu0 0.0
  %88 = vmatprep.subr.mxu0 0.0
  %89 = vmatpush1.msra.mxu0 0.0
  %90 = vmatprep.subr.mxu0 0.0
  %91 = vmatpush1.msra.mxu0 0.0
  %92 = vmatprep.subr.mxu0 0.0
  %93 = vmatpush1.msra.mxu0 0.0
  %94 = vmatprep.subr.mxu0 0.0
  %95 = vmatpush1.msra.mxu0 0.0
  %96 = vmatprep.subr.mxu0 0.0
  %97 = vmatpush1.msra.mxu0 0.0
  %98 = vmatprep.subr.mxu0 0.0
  %99 = vmatpush1.msra.mxu0 0.0
  %100 = vmatprep.subr.mxu0 0.0
  %101 = vmatpush1.msra.mxu0 0.0
  %102 = vmatprep.subr.mxu0 0.0
  %103 = vmatpush1.msra.mxu0 0.0
  %104 = vmatprep.mubr.f32.mxu0 0.0
  %105 = vmatmul.mubr.f32.gmra.mrb[0].mxu0 %v35
  %v106 = vpop.f32.mrb[0].mxu0
  %v107 = vadd.f32 %v31, %v106
  %v108 = vpop.f32.mrb[0].mxu0
  %109 = vmatprep.mubr.f32.mxu0 0.0
  %110 = vmatmul.mubr.f32.gmra.mrb[0].mxu0 %v38
  %v111 = vpop.f32.mrb[0].mxu0
  %v112 = vadd.f32 %v31, %v111
  %v113 = vpop.f32.mrb[0].mxu0
  %114 = vdwg.mxu0
  %v115 = vxor.u32 %v107, 2147483648
  %v116 = vxor.u32 %v112, 2147483648
  %v117 = vmul.f32 %v115, 1.442695
  %v118 = vpow.pop %v117
  %v119 = vmul.f32 %v116, 1.442695
  %v120 = vpow.pop %v119
  %v121 = vadd.f32 %v118, 1.0
  %v122 = vadd.f32 %v120, 1.0
  %v123 = vrcp.pop %v121
  %v124 = vmul.f32 1.0, %v123
  %v125 = vrcp.pop %v122
  %v126 = vmul.f32 1.0, %v125
  %v127 = vld [vmem:[%s3] sm:$0xff]
  %v128 = vld [vmem:[%s3 + $0x8] sm:$0xff]
  %v129 = vld [vmem:[%s3 + $0x10] sm:$0xff]
  %v130 = vld [vmem:[%s3 + $0x18] sm:$0xff]
  %v131 = vld [vmem:[%s3 + $0x20] sm:$0xff]
  %v132 = vld [vmem:[%s3 + $0x28] sm:$0xff]
  %v133 = vld [vmem:[%s3 + $0x30] sm:$0xff]
  %v134 = vld [vmem:[%s3 + $0x38] sm:$0xff]
  %v135 = vld [vmem:[%s3 + $0x40] sm:$0xff]
  %v136 = vld [vmem:[%s3 + $0x48] sm:$0xff]
  %v137 = vld [vmem:[%s3 + $0x50] sm:$0xff]
  %v138 = vld [vmem:[%s3 + $0x58] sm:$0xff]
  %v139 = vld [vmem:[%s3 + $0x60] sm:$0xff]
  %v140 = vld [vmem:[%s3 + $0x68] sm:$0xff]
  %v141 = vld [vmem:[%s3 + $0x70] sm:$0xff]
  %v142 = vld [vmem:[%s3 + $0x78] sm:$0xff]
  %v143 = vld [vmem:[%s4] sm:$0x1]
  %v145 = vlaneseq
  %v146 = vshrl.u32 %v145, 7
  %v147 = vsub.s32 0, %v146
  %v148 = vrot.slane %v143, %v147
  %150 = vmatprep.subr.mxu0 0.0
  %151 = vmatpush1.msra.mxu0 %v127
  %152 = vmatprep.subr.mxu0 0.0
  %153 = vmatpush1.msra.mxu0 %v128
  %154 = vmatprep.subr.mxu0 0.0
  %155 = vmatpush1.msra.mxu0 %v129
  %156 = vmatprep.subr.mxu0 0.0
  %157 = vmatpush1.msra.mxu0 %v130
  %158 = vmatprep.subr.mxu0 0.0
  %159 = vmatpush1.msra.mxu0 %v131
  %160 = vmatprep.subr.mxu0 0.0
  %161 = vmatpush1.msra.mxu0 %v132
  %162 = vmatprep.subr.mxu0 0.0
  %163 = vmatpush1.msra.mxu0 %v133
  %164 = vmatprep.subr.mxu0 0.0
  %165 = vmatpush1.msra.mxu0 %v134
  %166 = vmatprep.subr.mxu0 0.0
  %167 = vmatpush1.msra.mxu0 %v135
  %168 = vmatprep.subr.mxu0 0.0
  %169 = vmatpush1.msra.mxu0 %v136
  %170 = vmatprep.subr.mxu0 0.0
  %171 = vmatpush1.msra.mxu0 %v137
  %172 = vmatprep.subr.mxu0 0.0
  %173 = vmatpush1.msra.mxu0 %v138
  %174 = vmatprep.subr.mxu0 0.0
  %175 = vmatpush1.msra.mxu0 %v139
  %176 = vmatprep.subr.mxu0 0.0
  %177 = vmatpush1.msra.mxu0 %v140
  %178 = vmatprep.subr.mxu0 0.0
  %179 = vmatpush1.msra.mxu0 %v141
  %180 = vmatprep.subr.mxu0 0.0
  %181 = vmatpush1.msra.mxu0 %v142
  %182 = vmatprep.subr.mxu0 0.0
  %183 = vmatpush1.msra.mxu0 0.0
  %184 = vmatprep.subr.mxu0 0.0
  %185 = vmatpush1.msra.mxu0 0.0
  %186 = vmatprep.subr.mxu0 0.0
  %187 = vmatpush1.msra.mxu0 0.0
  %188 = vmatprep.subr.mxu0 0.0
  %189 = vmatpush1.msra.mxu0 0.0
  %190 = vmatprep.subr.mxu0 0.0
  %191 = vmatpush1.msra.mxu0 0.0
  %192 = vmatprep.subr.mxu0 0.0
  %193 = vmatpush1.msra.mxu0 0.0
  %194 = vmatprep.subr.mxu0 0.0
  %195 = vmatpush1.msra.mxu0 0.0
  %196 = vmatprep.subr.mxu0 0.0
  %197 = vmatpush1.msra.mxu0 0.0
  %198 = vmatprep.subr.mxu0 0.0
  %199 = vmatpush1.msra.mxu0 0.0
  %200 = vmatprep.subr.mxu0 0.0
  %201 = vmatpush1.msra.mxu0 0.0
  %202 = vmatprep.subr.mxu0 0.0
  %203 = vmatpush1.msra.mxu0 0.0
  %204 = vmatprep.subr.mxu0 0.0
  %205 = vmatpush1.msra.mxu0 0.0
  %206 = vmatprep.subr.mxu0 0.0
  %207 = vmatpush1.msra.mxu0 0.0
  %208 = vmatprep.subr.mxu0 0.0
  %209 = vmatpush1.msra.mxu0 0.0
  %210 = vmatprep.subr.mxu0 0.0
  %211 = vmatpush1.msra.mxu0 0.0
  %212 = vmatprep.subr.mxu0 0.0
  %213 = vmatpush1.msra.mxu0 0.0
  %214 = vmatprep.mubr.f32.mxu0 0.0
  %215 = vmatmul.mubr.f32.gmra.mrb[0].mxu0 %v124
  %v216 = vpop.f32.mrb[0].mxu0
  %v217 = vadd.f32 %v148, %v216
  %v218 = vpop.f32.mrb[0].mxu0
  %219 = vmatprep.mubr.f32.mxu0 0.0
  %220 = vmatmul.mubr.f32.gmra.mrb[0].mxu0 %v126
  %v221 = vpop.f32.mrb[0].mxu0
  %v222 = vadd.f32 %v148, %v221
  %v223 = vpop.f32.mrb[0].mxu0
  %224 = vdwg.mxu0
  %v225 = vxor.u32 %v217, 2147483648
  %v226 = vxor.u32 %v222, 2147483648
  %v227 = vmul.f32 %v225, 1.442695
  %v228 = vpow.pop %v227
  %v229 = vmul.f32 %v226, 1.442695
  %v230 = vpow.pop %v229
  %v231 = vadd.f32 %v228, 1.0
  %v232 = vadd.f32 %v230, 1.0
  %v233 = vrcp.pop %v231
  %v234 = vmul.f32 1.0, %v233
  %v235 = vrcp.pop %v232
  %v236 = vmul.f32 1.0, %v235
  %vm237 = vcmask 64512
  %238 = vst.msk [vmem:[%s5] sm:$0xff] %vm237, %v234
  %239 = vst.msk [vmem:[%s5 + $0x8] sm:$0xff] %vm237, %v236
  // Predicated region
  $region22: #{tpu_custom_call.1} parent=0 // pred_check
    _
  $region23: #{tpu_custom_call.1} parent=0 // pred_check_branch
    %241 = sbr.rel (0) target = $region25
  $region24: #{tpu_custom_call.1} parent=0 // pred_region
    _
  $region25: #{tpu_custom_call.1} parent=0 // pred_fallthru
    _
  // Predicated region
  $region26: #{tpu_custom_call.1} parent=0 // pred_check
    _
  $region27: #{tpu_custom_call.1} parent=0 // pred_check_branch
    %243 = sbr.rel (0) target = $region29
  $region28: #{tpu_custom_call.1} parent=0 // pred_region
    _
  $region29: #{tpu_custom_call.1} parent=0 // pred_fallthru
    _

</llo_original>
